<compile_context>
chip_gen: v6e
topology: v6e:2x2x1
jax: 0.10.0
libtpu: 0.0.40
codegen_flags: <defaults>
</compile_context>

<pallas_src>
import math

import jax
import jax.numpy as jnp
from jax import lax
from jax.experimental import pallas as pl
from jax.experimental.pallas import tpu as pltpu


def _qkv_proj_kernel(x_ref, w_ref, o_ref):
    # One fused, lane-dense projection tile: (tm, D) @ (D, 3*H*dh).
    o_ref[...] = jnp.dot(x_ref[...], w_ref[...],
                         preferred_element_type=jnp.float32).astype(o_ref.dtype)


def _flash_attn_kernel(q_ref, k_ref, v_ref, wo_ref, o_ref, m_sc, l_sc, acc_sc):
    # q_ref : (H, tq, dh)  queries, pre-scaled by 1/sqrt(d_head)
    # k_ref : (H, tk, dh)
    # v_ref : (H, tk, dh)
    # wo_ref: (H, dh, D)   W_O split per head: wo_ref[h, c, d] = W_O[d, h*dh+c]
    # o_ref : (tq, D)
    # scratch: m_sc / l_sc (H, tq, 1) f32, acc_sc (H, tq, dh) f32
    qi = pl.program_id(1)
    ki = pl.program_id(2)
    nk = pl.num_programs(2)
    H, tq, dh = q_ref.shape
    tk = k_ref.shape[1]
    # Matches the reference masked logit: (0 - 1e10) / sqrt(d_head).
    mask_val = -1e10 / math.sqrt(dh)

    @pl.when(ki == 0)
    def _init():
        m_sc[...] = jnp.full(m_sc.shape, -1e30, dtype=m_sc.dtype)
        l_sc[...] = jnp.zeros(l_sc.shape, dtype=l_sc.dtype)
        acc_sc[...] = jnp.zeros(acc_sc.shape, dtype=acc_sc.dtype)

    # Causal tile skip (tq == tk): KV tiles strictly in the future of every
    # query row contribute nothing.  Their DMA is also skipped because the
    # k/v index_maps clamp the block index for those iterations.
    @pl.when(ki <= qi)
    def _update():
        q = q_ref[...]
        k = k_ref[...]
        v = v_ref[...]
        # Head-batched scores: (H, tq, tk), f32 accumulation on the MXU.
        s = lax.dot_general(q, k, (((2,), (2,)), ((0,), (0,))),
                            preferred_element_type=jnp.float32)
        # In-kernel causal mask (applied in f32, before any narrowing).
        row = qi * tq + lax.broadcasted_iota(jnp.int32, (tq, tk), 0)
        col = ki * tk + lax.broadcasted_iota(jnp.int32, (tq, tk), 1)
        s = jnp.where((col <= row)[None, :, :], s, mask_val)

        m_prev = m_sc[...]                                      # (H, tq, 1)
        m_new = jnp.maximum(m_prev, jnp.max(s, axis=-1, keepdims=True))
        alpha = jnp.exp(m_prev - m_new)
        p = jnp.exp(s - m_new)                                  # (H, tq, tk) f32
        l_sc[...] = alpha * l_sc[...] + jnp.sum(p, axis=-1, keepdims=True)
        acc_sc[...] = alpha * acc_sc[...] + lax.dot_general(
            p.astype(v.dtype), v, (((2,), (1,)), ((0,), (0,))),
            preferred_element_type=jnp.float32)                 # (H, tq, dh)
        m_sc[...] = m_new

    @pl.when(ki == nk - 1)
    def _finalize():
        # Exact normalization (the approximate EUP reciprocal caused the
        # previous numeric mismatch; this runs once per output row).
        z = acc_sc[...] / l_sc[...]                             # (H, tq, dh) f32
        out_h = lax.dot_general(z.astype(wo_ref.dtype), wo_ref[...],
                                (((2,), (1,)), ((0,), (0,))),
                                preferred_element_type=jnp.float32)  # (H, tq, D)
        o_ref[...] = jnp.sum(out_h, axis=0).astype(o_ref.dtype)


def _choose_tile(s):
    # Prefer 256 (v6e/v7x MXU depth) or 128 when they tile s exactly, else the
    # largest that fits (sequence is padded up), else a sublane multiple for
    # tiny sequences.  Never falls back to the full (huge) sequence.
    for t in (256, 128):
        if s % t == 0:
            return t
    for t in (256, 128):
        if s >= t:
            return t
    return ((s + 7) // 8) * 8


def _row_tile(rows):
    for t in (512, 256, 128):
        if rows % t == 0:
            return t
    return rows


def attention_pallas(x, W_Q, W_K, W_V, W_O, *, compute_dtype=None):
    """Causal multi-head attention matching Attention.forward.

    compute_dtype: dtype fed to the MXU (use jnp.bfloat16 on v6e/v7x for ~3x
    matmul throughput and halved HBM traffic); accumulation and softmax stay
    in f32.  None keeps x.dtype (exact f32 path).
    """
    B, S, D = x.shape
    H, dh, _ = W_Q.shape
    hdh = H * dh
    cdt = jnp.dtype(compute_dtype) if compute_dtype is not None else x.dtype
    out_dtype = x.dtype
    inv_sqrt_dh = 1.0 / math.sqrt(dh)

    # ---- one-time host-side weight packing (layout plumbing, not compute) ----
    # Fused QKV weights, pre-transposed to (D, 3*H*dh), head-major columns;
    # the 1/sqrt(d_head) scale is folded into the Q columns.
    w_qkv = jnp.concatenate(
        [(W_Q * inv_sqrt_dh).reshape(hdh, D),
         W_K.reshape(hdh, D),
         W_V.reshape(hdh, D)], axis=0).T.astype(cdt)            # (D, 3*H*dh)
    # W_O split per head: wo_h[h, c, d] = W_O[d, h*dh + c].
    wo_h = jnp.transpose(W_O.reshape(D, H, dh), (1, 2, 0)).astype(cdt)  # (H,dh,D)

    # ---- pad the sequence to a tile multiple (trailing zero padding is
    #      masked out by causality for real rows; padded rows are sliced off) ----
    tile = _choose_tile(S)
    Sp = pl.cdiv(S, tile) * tile
    if Sp != S:
        x = jnp.pad(x, ((0, 0), (0, Sp - S), (0, 0)))

    # ---- kernel 1: fused QKV projection, hoisted out of the attention grid
    #      (each row projected exactly once; no projection weights resident
    #      in the attention kernel) ----
    rows = B * Sp
    tm = _row_tile(rows)
    xf = x.reshape(rows, D).astype(cdt)
    isz = jnp.dtype(cdt).itemsize
    qkv = pl.pallas_call(
        _qkv_proj_kernel,
        out_shape=jax.ShapeDtypeStruct((rows, 3 * hdh), cdt),
        grid=(rows // tm,),
        in_specs=[pl.BlockSpec((tm, D), lambda i: (i, 0)),
                  pl.BlockSpec((D, 3 * hdh), lambda i: (0, 0))],
        out_specs=pl.BlockSpec((tm, 3 * hdh), lambda i: (i, 0)),
        compiler_params=pltpu.CompilerParams(dimension_semantics=("parallel",)),
        cost_estimate=pl.CostEstimate(
            flops=2 * rows * D * 3 * hdh,
            transcendentals=0,
            bytes_accessed=isz * (rows * D + D * 3 * hdh + rows * 3 * hdh)),
    )(xf, w_qkv)

    # Layout plumbing in XLA: (rows, 3*H*dh) -> head-batched (B, H, Sp, dh).
    qkv = qkv.reshape(B, Sp, 3, H, dh)
    q = jnp.transpose(qkv[:, :, 0], (0, 2, 1, 3))
    k = jnp.transpose(qkv[:, :, 1], (0, 2, 1, 3))
    v = jnp.transpose(qkv[:, :, 2], (0, 2, 1, 3))

    # ---- kernel 2: flash attention (online softmax) + W_O projection ----
    nq = Sp // tile
    o_isz = jnp.dtype(out_dtype).itemsize
    out = pl.pallas_call(
        _flash_attn_kernel,
        out_shape=jax.ShapeDtypeStruct((B, Sp, D), out_dtype),
        grid_spec=pltpu.PrefetchScalarGridSpec(
            num_scalar_prefetch=0,
            grid=(B, nq, nq),
            in_specs=[
                pl.BlockSpec((None, H, tile, dh),
                             lambda b, qi, ki: (b, 0, qi, 0)),
                # Clamp the kv block index so causally-skipped tiles re-use the
                # previous block -> no wasted DMA (pairs with pl.when(ki <= qi)).
                pl.BlockSpec((None, H, tile, dh),
                             lambda b, qi, ki: (b, 0, jnp.minimum(ki, qi), 0)),
                pl.BlockSpec((None, H, tile, dh),
                             lambda b, qi, ki: (b, 0, jnp.minimum(ki, qi), 0)),
                pl.BlockSpec((H, dh, D), lambda b, qi, ki: (0, 0, 0)),
            ],
            # TODO(synk): for d_model < 128 this output block is not lane-dense
            # (masked vst); pad D or fold batch rows if traces show it matters.
            out_specs=pl.BlockSpec((None, tile, D), lambda b, qi, ki: (b, qi, 0)),
            scratch_shapes=[
                pltpu.VMEM((H, tile, 1), jnp.float32),    # running max
                pltpu.VMEM((H, tile, 1), jnp.float32),    # running denominator
                pltpu.VMEM((H, tile, dh), jnp.float32),   # output accumulator
            ],
        ),
        compiler_params=pltpu.CompilerParams(
            dimension_semantics=("parallel", "parallel", "arbitrary")),
        cost_estimate=pl.CostEstimate(
            flops=4 * B * H * Sp * Sp * dh + 2 * B * Sp * hdh * D,
            transcendentals=B * H * Sp * Sp,
            bytes_accessed=isz * (3 * B * H * Sp * dh + H * dh * D)
                           + o_isz * B * Sp * D),
    )(q, k, v, wo_h)

    return out[:, :S, :]


def attention_reference(x, W_Q, W_K, W_V, W_O, mask, d_head):
    """Pure-JAX reference mirroring the torch forward exactly."""
    k = jnp.einsum('ihd,bpd->biph', W_K, x)
    q = jnp.einsum('ihd,bpd->biph', W_Q, x)
    v = jnp.einsum('ihd,bpd->biph', W_V, x)
    scores_pre = jnp.einsum('biph,biqh->biqp', k, q)
    S = x.shape[-2]
    m = mask[:S, :S]
    scores_masked = jnp.tril(scores_pre) - 1e10 * (1.0 - m)
    attn = jax.nn.softmax(scores_masked / jnp.sqrt(jnp.float32(d_head)), axis=-1)
    z = jnp.einsum('biph,biqp->biqh', v, attn)
    B, H, Sq, dh = z.shape
    z_flat = jnp.transpose(z, (0, 2, 1, 3)).reshape(B, Sq, H * dh)
    return jnp.einsum('df,bqf->bqd', W_O, z_flat)


if __name__ == "__main__":
    # Small shapes consistent with the module's forward.
    batch, seq = 2, 8
    d_model, num_heads, d_head, n_ctx = 32, 4, 8, 8

    key = jax.random.PRNGKey(0)
    kq, kk, kv_key, ko, kx = jax.random.split(key, 5)

    scale = 1.0 / math.sqrt(d_model)
    W_Q = jax.random.normal(kq, (num_heads, d_head, d_model), jnp.float32) * scale
    W_K = jax.random.normal(kk, (num_heads, d_head, d_model), jnp.float32) * scale
    W_V = jax.random.normal(kv_key, (num_heads, d_head, d_model), jnp.float32) * scale
    W_O = jax.random.normal(ko, (d_model, num_heads * d_head), jnp.float32) * scale
    mask = jnp.tril(jnp.ones((n_ctx, n_ctx), jnp.float32))

    x = jax.random.normal(kx, (batch, seq, d_model), jnp.float32)

    ref = attention_reference(x, W_Q, W_K, W_V, W_O, mask, d_head)

    # Exact f32 path (default): must match the reference tightly.
    out = jax.block_until_ready(attention_pallas(x, W_Q, W_K, W_V, W_O))
    assert out.shape == (batch, seq, d_model)
    assert jnp.allclose(out, ref, atol=2e-3, rtol=2e-3), \
        "Pallas output mismatch vs reference (f32 path)"

    # bf16 MXU-operand path (perf feedback): f32 accumulation/softmax; just a
    # loose sanity bound against the f32 reference.
    out_bf16 = jax.block_until_ready(
        attention_pallas(x, W_Q, W_K, W_V, W_O, compute_dtype=jnp.bfloat16))
    assert out_bf16.shape == (batch, seq, d_model)
    assert bool(jnp.all(jnp.isfinite(out_bf16)))
    assert float(jnp.max(jnp.abs(out_bf16 - ref))) < 0.3, \
        "bf16 MXU-operand path deviates too far from the f32 reference"

    print("KERNEL_OK")
</pallas_src>

<mosaic_0001>
module attributes {stable_mosaic.version = 11 : i64} {
  func.func @_qkv_proj_kernel(%arg0: i32, %arg1: memref<16x32xf32, #tpu.memory_space<vmem>>, %arg2: memref<32x96xf32, #tpu.memory_space<vmem>>, %arg3: memref<16x96xf32, #tpu.memory_space<vmem>>) attributes {dimension_semantics = [#tpu.dimension_semantics<parallel>], iteration_bounds = array<i64: 1>, scalar_prefetch = 0 : i64, scratch_operands = 0 : i64, tpu.core_type = #tpu.core_type<tc>, window_params = [{transform_indices = @transform_0, window_bounds = array<i64: 16, 32>}, {pipeline_mode = #tpu.pipeline_mode<synchronous>, transform_indices = @transform_1, window_bounds = array<i64: 32, 96>}, {transform_indices = @transform_2, window_bounds = array<i64: 16, 96>}]} {
    %c0 = arith.constant 0 : index
    %c0_0 = arith.constant 0 : index
    %0 = vector.load %arg1[%c0, %c0_0] : memref<16x32xf32, #tpu.memory_space<vmem>>, vector<16x32xf32>
    %c0_1 = arith.constant 0 : index
    %c0_2 = arith.constant 0 : index
    %1 = vector.load %arg2[%c0_1, %c0_2] : memref<32x96xf32, #tpu.memory_space<vmem>>, vector<32x96xf32>
    %cst = arith.constant dense<0.000000e+00> : vector<16x96xf32>
    %2 = tpu.matmul %0, %1, %cst {dimension_numbers = #tpu.dot_dimension_numbers<[1], [0], [0], [1], [0, 0, 1, 1], [], []>} : vector<16x32xf32>, vector<32x96xf32>, vector<16x96xf32> -> vector<16x96xf32>
    %c0_3 = arith.constant 0 : index
    %c0_4 = arith.constant 0 : index
    %3 = vector.load %arg3[%c0_3, %c0_4] : memref<16x96xf32, #tpu.memory_space<vmem>>, vector<16x96xf32>
    tpu.vector_store %arg3[%c0_3, %c0_4], %2 {strides = array<i32>} : memref<16x96xf32, #tpu.memory_space<vmem>>, vector<16x96xf32>,
    return
  }
  func.func @transform_0(%arg0: i32) -> (i32, i32) {
    %c0_i32 = arith.constant 0 : i32
    %c0_i32_0 = arith.constant 0 : i32
    return %arg0, %c0_i32 : i32, i32
  }
  func.func @transform_1(%arg0: i32) -> (i32, i32) {
    %c0_i32 = arith.constant 0 : i32
    %c0_i32_0 = arith.constant 0 : i32
    %c0_i32_1 = arith.constant 0 : i32
    return %c0_i32, %c0_i32_0 : i32, i32
  }
  func.func @transform_2(%arg0: i32) -> (i32, i32) {
    %c0_i32 = arith.constant 0 : i32
    %c0_i32_0 = arith.constant 0 : i32
    return %arg0, %c0_i32 : i32, i32
  }
}

</mosaic_0001>

<llo_original>
// kernel: tpu_custom_call.1
$region0: #{tpu_custom_call.1}
  #allocation0 [shape = 'u32[]', space=smem, size = 0x4, offset = 0x4, fixed_abs, tag = 'smem constant byte address 0x4 - core index']
  #allocation1 [shape = 'u32[144,128]{1,0:T(1,128)}', space=vmem, size = 0x12000, scoped, tag = 'internal scratch']
  %s0 = inlined_call_operand.hbm [shape: f32[16,32], index: 0, kind: input, shape index: {}]
  %s1 = inlined_call_operand.hbm [shape: f32[32,96], index: 1, kind: input, shape index: {}]
  %s2 = inlined_call_operand.hbm [shape: f32[16,96], index: 2, kind: output, shape index: {}]
  %s3 = sld [smem:[#allocation0]]
  $region26: #{tpu_custom_call.1} parent=0
    _
  %s5 = ssub.s32 1, %s3
  %s6 = scalar_select 0, %s5, %s3
  $region1: #{tpu_custom_call.1} parent=0
    #allocation2 [shape = 'u8[8192]{0}', space=vmem, size = 0x2000, scoped, tag = 'input window, operand 0, single buffered']
    #allocation3 [shape = 's32[1]{0}', space=sflag, size = 0x4, scoped, tag = 'scoped memory for tpu_custom_call.1']
    #allocation4 [shape = 's32[1]{0}', space=sflag, size = 0x4, scoped, tag = 'scoped memory for tpu_custom_call.1']
    #allocation5 [shape = 'u8[16384]{0}', space=vmem, size = 0x4000, scoped, tag = 'input window, operand 1, single buffered']
    #allocation6 [shape = 's32[1]{0}', space=sflag, size = 0x4, scoped, tag = 'scoped memory for tpu_custom_call.1']
    #allocation7 [shape = 'u8[8192]{0}', space=vmem, size = 0x2000, scoped, tag = 'output window, operand 0, single buffered']
    %7 = vsyncpa [#allocation3], 0
    %8 = vsyncpa [#allocation6], 0
    %9 = vsyncpa [#allocation4], 0
    // Predicated region
    $region2: #{tpu_custom_call.1} parent=1 // pred_check
      _
    $region3: #{tpu_custom_call.1} parent=1 // pred_check_branch
      %11 = sbr.rel (0) target = $region5
    $region4: #{tpu_custom_call.1} parent=1 // pred_region
      %s13 = ssub.s32 256, 256
      %14 = vsyncadd [#allocation3], %s13
      %s15 = sshll.u32 [#allocation2], 4
      %s16 = int_to_ptr.vmem [resolvable:$true] %s15
      %21 = dma.hbm_to_vmem [thread:$0]  %s0, 256, %s16, [#allocation3], 128, 128, 8
    $region5: #{tpu_custom_call.1} parent=1 // pred_fallthru
      _
    // Predicated region
    $region6: #{tpu_custom_call.1} parent=1 // pred_check
      _
    $region7: #{tpu_custom_call.1} parent=1 // pred_check_branch
      %23 = sbr.rel (0) target = $region9
    $region8: #{tpu_custom_call.1} parent=1 // pred_region
      %s25 = ssub.s32 512, 512
      %26 = vsyncadd [#allocation6], %s25
      %s27 = sshll.u32 [#allocation5], 4
      %s28 = int_to_ptr.vmem [resolvable:$true] %s27
      %33 = dma.hbm_to_vmem [thread:$0]  %s1, 512, %s28, [#allocation6], 128, 128, 8
    $region9: #{tpu_custom_call.1} parent=1 // pred_fallthru
      _
    // Predicated region
    $region10: #{tpu_custom_call.1} parent=1 // pred_check
      _
    $region11: #{tpu_custom_call.1} parent=1 // pred_check_branch
      %35 = sbr.rel (0) target = $region13
    $region12: #{tpu_custom_call.1} parent=1 // pred_region
      %36 = dma.done [#allocation3], 256
    $region13: #{tpu_custom_call.1} parent=1 // pred_fallthru
      _
    // Predicated region
    $region14: #{tpu_custom_call.1} parent=1 // pred_check
      _
    $region15: #{tpu_custom_call.1} parent=1 // pred_check_branch
      %38 = sbr.rel (0) target = $region17
    $region16: #{tpu_custom_call.1} parent=1 // pred_region
      %39 = dma.done [#allocation6], 512
    $region17: #{tpu_custom_call.1} parent=1 // pred_fallthru
      _
    %v40 = vld [vmem:[#allocation2] sm:$0xff]
    %v41 = vld [vmem:[#allocation2 + $0x8] sm:$0xff]
    %v42 = vld [vmem:[#allocation5] sm:$0xff]
    %v43 = vld [vmem:[#allocation5 + $0x8] sm:$0xff]
    %v44 = vld [vmem:[#allocation5 + $0x10] sm:$0xff]
    %v45 = vld [vmem:[#allocation5 + $0x18] sm:$0xff]
    %vm46 = vcmask 261120
    %v48 = vsel %vm46, %v40, 0
    %v51 = vsel %vm46, %v41, 0
    %53 = vmatprep.subr.mxu0 0.0
    %54 = vmatpush1.msra.mxu0 0.0
    %55 = vmatprep.subr.mxu0 0.0
    %56 = vmatpush1.msra.mxu0 0.0
    %57 = vmatprep.subr.mxu0 0.0
    %58 = vmatpush1.msra.mxu0 0.0
    %59 = vmatprep.subr.mxu0 0.0
    %60 = vmatpush1.msra.mxu0 0.0
    %61 = vmatprep.subr.mxu0 0.0
    %62 = vmatpush1.msra.mxu0 0.0
    %63 = vmatprep.subr.mxu0 0.0
    %64 = vmatpush1.msra.mxu0 0.0
    %65 = vmatprep.subr.mxu0 0.0
    %66 = vmatpush1.msra.mxu0 0.0
    %67 = vmatprep.subr.mxu0 0.0
    %68 = vmatpush1.msra.mxu0 0.0
    %69 = vmatprep.subr.mxu0 0.0
    %70 = vmatpush1.msra.mxu0 0.0
    %71 = vmatprep.subr.mxu0 0.0
    %72 = vmatpush1.msra.mxu0 0.0
    %73 = vmatprep.subr.mxu0 0.0
    %74 = vmatpush1.msra.mxu0 0.0
    %75 = vmatprep.subr.mxu0 0.0
    %76 = vmatpush1.msra.mxu0 0.0
    %77 = vmatprep.subr.mxu0 0.0
    %78 = vmatpush1.msra.mxu0 %v45
    %79 = vmatprep.subr.mxu0 0.0
    %80 = vmatpush1.msra.mxu0 %v44
    %81 = vmatprep.subr.mxu0 0.0
    %82 = vmatpush1.msra.mxu0 %v43
    %83 = vmatprep.subr.mxu0 0.0
    %84 = vmatpush1.msra.mxu0 %v42
    %85 = vmatprep.subr.mxu0 0.0
    %86 = vmatpush2.msra.mxu0 0.0
    %87 = vmatprep.subr.mxu0 0.0
    %88 = vmatpush2.msra.mxu0 0.0
    %89 = vmatprep.subr.mxu0 0.0
    %90 = vmatpush2.msra.mxu0 0.0
    %91 = vmatprep.subr.mxu0 0.0
    %92 = vmatpush2.msra.mxu0 0.0
    %93 = vmatprep.subr.mxu0 0.0
    %94 = vmatpush2.msra.mxu0 0.0
    %95 = vmatprep.subr.mxu0 0.0
    %96 = vmatpush2.msra.mxu0 0.0
    %97 = vmatprep.subr.mxu0 0.0
    %98 = vmatpush2.msra.mxu0 0.0
    %99 = vmatprep.subr.mxu0 0.0
    %100 = vmatpush2.msra.mxu0 0.0
    %101 = vmatprep.subr.mxu0 0.0
    %102 = vmatpush2.msra.mxu0 0.0
    %103 = vmatprep.subr.mxu0 0.0
    %104 = vmatpush2.msra.mxu0 0.0
    %105 = vmatprep.subr.mxu0 0.0
    %106 = vmatpush2.msra.mxu0 0.0
    %107 = vmatprep.subr.mxu0 0.0
    %108 = vmatpush2.msra.mxu0 0.0
    %109 = vmatprep.subr.mxu0 0.0
    %110 = vmatpush2.msra.mxu0 0.0
    %111 = vmatprep.subr.mxu0 0.0
    %112 = vmatpush2.msra.mxu0 0.0
    %113 = vmatprep.subr.mxu0 0.0
    %114 = vmatpush2.msra.mxu0 0.0
    %115 = vmatprep.subr.mxu0 0.0
    %116 = vmatpush2.msra.mxu0 0.0
    %117 = vmatprep.mubr.f32.mxu0 0.0
    %118 = vmatmul.mubr.f32.gmra.mxu0 %v48
    %v119 = vpop.f32.mrf.mxu0
    %v120 = vadd.f32 0.0, %v119
    %v121 = vpop.f32.mrf.mxu0
    %122 = vmatprep.mubr.f32.mxu0 0.0
    %123 = vmatmul.mubr.f32.gmra.mxu0 %v51
    %v124 = vpop.f32.mrf.mxu0
    %v125 = vadd.f32 0.0, %v124
    %v126 = vpop.f32.mrf.mxu0
    %127 = vdwg.mxu0
    %vm128 = vcmask 785408
    %129 = vst.msk [vmem:[#allocation7] sm:$0xff] %vm128, %v120
    %130 = vst.msk [vmem:[#allocation7 + $0x8] sm:$0xff] %vm128, %v125
    // Predicated region
    $region18: #{tpu_custom_call.1} parent=1 // pred_check
      _
    $region19: #{tpu_custom_call.1} parent=1 // pred_check_branch
      %132 = sbr.rel (0) target = $region21
    $region20: #{tpu_custom_call.1} parent=1 // pred_region
      %s134 = ssub.s32 256, 256
      %135 = vsyncadd [#allocation4], %s134
      %s136 = sshll.u32 [#allocation7], 4
      %s137 = int_to_ptr.vmem [resolvable:$true] %s136
      %142 = dma.vmem_to_hbm [thread:$0]  %s137, 256, %s2, [#allocation4], 128, 128, 8
    $region21: #{tpu_custom_call.1} parent=1 // pred_fallthru
      _
    // Predicated region
    $region22: #{tpu_custom_call.1} parent=1 // pred_check
      _
    $region23: #{tpu_custom_call.1} parent=1 // pred_check_branch
      %144 = sbr.rel (0) target = $region25
    $region24: #{tpu_custom_call.1} parent=1 // pred_region
      %145 = dma.done [#allocation4], 256
    $region25: #{tpu_custom_call.1} parent=1 // pred_fallthru
      _
    %146 = vsyncpa [#allocation3], 1
    %147 = vsyncpa [#allocation6], 1
    %148 = vsyncpa [#allocation4], 1

</llo_original>
